<compile_context>
chip_gen: v7x
topology: tpu7x:2x2x1
jax: 0.10.0
libtpu: 0.0.40
codegen_flags: <defaults>
</compile_context>

<pallas_src>
import functools

import numpy as np
import jax
import jax.numpy as jnp
from jax import lax
from jax.experimental import pallas as pl
from jax.experimental.pallas import tpu as pltpu


def _round_up(n, m):
    return ((n + m - 1) // m) * m


def _plain_head_kernel(x_ref, w_ref, b_ref, out_ref, *, c_dim, hw, topk):
    # x_ref: (C, bb, hw) VMEM    w_ref: (C,) SMEM    b_ref: (1,) SMEM
    # out_ref: (bb, 1) VMEM
    # 1x1 scoring conv as a C-step scalar*tile accumulate (VPU only).
    s = x_ref[0] * w_ref[0]
    for c in range(1, c_dim):
        s = s + x_ref[c] * w_ref[c]
    s = s + b_ref[0]

    # |s| >= 0, so its f32 bit pattern is order-preserving when viewed as int32.
    a_bits = pltpu.bitcast(jnp.abs(s), jnp.int32)            # (bb, hw)
    bb = a_bits.shape[0]
    kf = jnp.float32(topk)

    # Bitwise binary search (MSB -> LSB over the 31 non-sign bits) for the
    # k-th largest value: t ends as the largest pattern with count(>= t) >= k,
    # i.e. the bit pattern of the k-th largest element.
    def bit_body(i, t):
        cand = t | (jnp.int32(1) << (jnp.int32(30) - i))      # (bb, 1)
        ge = a_bits >= cand                                    # (bb, hw)
        cnt = jnp.sum(jnp.where(ge, 1.0, 0.0), axis=1, keepdims=True)
        return jnp.where(cnt >= kf, cand, t)

    t = lax.fori_loop(0, 31, bit_body,
                      jnp.zeros((bb, 1), jnp.int32), unroll=True)

    # Exact top-k sum: everything strictly above the threshold plus the
    # threshold value repeated to fill the remaining slots (handles ties).
    a_f = pltpu.bitcast(a_bits, jnp.float32)
    gt = a_bits > t
    cnt_gt = jnp.sum(jnp.where(gt, 1.0, 0.0), axis=1, keepdims=True)
    sum_gt = jnp.sum(jnp.where(gt, a_f, 0.0), axis=1, keepdims=True)
    thr = pltpu.bitcast(t, jnp.float32)                        # (bb, 1)
    out_ref[...] = (sum_gt + (kf - cnt_gt) * thr) * (1.0 / topk)


def plain_head(x, params, topk_rate=0.1):
    """x: (B, C, H, W) float32 (NCHW, as in PyTorch).  Returns (B, 1)."""
    B, C, H, W = x.shape
    hw = H * W
    topk = max(int(hw * topk_rate), 1)

    w1 = params["w1"].reshape(C).astype(jnp.float32)      # (1, C, 1, 1) -> (C,)
    b1 = params["b1"].reshape(1).astype(jnp.float32)      # (1,)

    # Relayout: (B, C, H, W) -> (C, B, H*W); lanes = H*W (dense), sublanes = batch.
    xt = jnp.transpose(x.reshape(B, C, hw).astype(jnp.float32), (1, 0, 2))

    # Adaptive batch blocking: don't over-pad tiny batches, cap at 64 rows
    # (vreg pressure), and aim for >= 2 grid steps so the "parallel" batch
    # axis can shard across v7x's two TensorCores when B is large enough.
    b_pad8 = _round_up(B, 8)
    if b_pad8 <= 8:
        bb = 8
    else:
        bb = min(64, _round_up((b_pad8 + 1) // 2, 8))
    b_pad = _round_up(b_pad8, bb)
    if b_pad != B:
        xt = jnp.pad(xt, ((0, 0), (0, b_pad - B), (0, 0)))

    kernel = functools.partial(_plain_head_kernel, c_dim=C, hw=hw, topk=topk)

    out = pl.pallas_call(
        kernel,
        out_shape=jax.ShapeDtypeStruct((b_pad, 1), jnp.float32),
        grid_spec=pltpu.PrefetchScalarGridSpec(
            num_scalar_prefetch=0,
            grid=(b_pad // bb,),
            in_specs=[
                pl.BlockSpec((C, bb, hw), lambda i: (0, i, 0)),            # x block
                pl.BlockSpec(memory_space=pltpu.MemorySpace.SMEM),         # weight
                pl.BlockSpec(memory_space=pltpu.MemorySpace.SMEM),         # bias
            ],
            # Each grid step writes its own (bb, 1) block -> safe to parallelize.
            out_specs=pl.BlockSpec((bb, 1), lambda i: (i, 0)),
        ),
        compiler_params=pltpu.CompilerParams(
            dimension_semantics=("parallel",)),
    )(xt, w1, b1)
    return out[:B]


def plain_head_reference(x, params, topk_rate=0.1):
    """Pure-JAX reference of the PlainHead forward pass."""
    B, C, H, W = x.shape
    topk = max(int(H * W * topk_rate), 1)
    s = jnp.einsum("bchw,c->bhw", x, params["w1"].reshape(C)) + params["b1"][0]
    flat = jnp.abs(s.reshape(B, -1))
    vals = lax.top_k(flat, topk)[0]
    return jnp.mean(vals, axis=1, keepdims=True)


if __name__ == "__main__":
    key = jax.random.PRNGKey(0)
    B, C, H, W = 2, 4, 16, 16
    ks = jax.random.split(key, 3)
    x = jax.random.normal(ks[0], (B, C, H, W), jnp.float32)
    params = {
        "w1": jax.random.normal(ks[1], (1, C, 1, 1), jnp.float32),
        "b1": 0.1 * jax.random.normal(ks[2], (1,), jnp.float32),
    }

    out = jax.block_until_ready(plain_head(x, params))
    expected = plain_head_reference(x, params)
    np.testing.assert_allclose(np.asarray(out), np.asarray(expected),
                               rtol=1e-4, atol=1e-5)
    print("KERNEL_OK")
</pallas_src>

<mosaic_0001>
module attributes {stable_mosaic.version = 11 : i64} {
  func.func @_plain_head_kernel(%arg0: i32, %arg1: memref<4x8x256xf32, #tpu.memory_space<vmem>>, %arg2: memref<4xf32, #tpu.memory_space<smem>>, %arg3: memref<1xf32, #tpu.memory_space<smem>>, %arg4: memref<8x1xf32, #tpu.memory_space<vmem>>) attributes {dimension_semantics = [#tpu.dimension_semantics<parallel>], iteration_bounds = array<i64: 1>, scalar_prefetch = 0 : i64, scratch_operands = 0 : i64, tpu.core_type = #tpu.core_type<tc>, window_params = [{transform_indices = @transform_0, window_bounds = array<i64: 4, 8, 256>}, {transform_indices = @transform_1, window_bounds = array<i64: 4>}, {transform_indices = @transform_2, window_bounds = array<i64: 1>}, {transform_indices = @transform_3, window_bounds = array<i64: 8, 1>}]} {
    %c0 = arith.constant 0 : index
    %c0_0 = arith.constant 0 : index
    %c0_1 = arith.constant 0 : index
    %0 = vector.load %arg1[%c0, %c0_0, %c0_1] : memref<4x8x256xf32, #tpu.memory_space<vmem>>, vector<1x8x256xf32>
    %1 = vector.shape_cast %0 : vector<1x8x256xf32> to vector<8x256xf32>
    %c0_2 = arith.constant 0 : index
    %2 = memref.load %arg2[%c0_2] : memref<4xf32, #tpu.memory_space<smem>>
    %3 = vector.broadcast %2 : f32 to vector<8x256xf32>
    %4 = arith.mulf %1, %3 : vector<8x256xf32>
    %c1 = arith.constant 1 : index
    %c0_3 = arith.constant 0 : index
    %c0_4 = arith.constant 0 : index
    %5 = vector.load %arg1[%c1, %c0_3, %c0_4] : memref<4x8x256xf32, #tpu.memory_space<vmem>>, vector<1x8x256xf32>
    %6 = vector.shape_cast %5 : vector<1x8x256xf32> to vector<8x256xf32>
    %c1_5 = arith.constant 1 : index
    %7 = memref.load %arg2[%c1_5] : memref<4xf32, #tpu.memory_space<smem>>
    %8 = vector.broadcast %7 : f32 to vector<8x256xf32>
    %9 = arith.mulf %6, %8 : vector<8x256xf32>
    %10 = arith.addf %4, %9 : vector<8x256xf32>
    %c2 = arith.constant 2 : index
    %c0_6 = arith.constant 0 : index
    %c0_7 = arith.constant 0 : index
    %11 = vector.load %arg1[%c2, %c0_6, %c0_7] : memref<4x8x256xf32, #tpu.memory_space<vmem>>, vector<1x8x256xf32>
    %12 = vector.shape_cast %11 : vector<1x8x256xf32> to vector<8x256xf32>
    %c2_8 = arith.constant 2 : index
    %13 = memref.load %arg2[%c2_8] : memref<4xf32, #tpu.memory_space<smem>>
    %14 = vector.broadcast %13 : f32 to vector<8x256xf32>
    %15 = arith.mulf %12, %14 : vector<8x256xf32>
    %16 = arith.addf %10, %15 : vector<8x256xf32>
    %c3 = arith.constant 3 : index
    %c0_9 = arith.constant 0 : index
    %c0_10 = arith.constant 0 : index
    %17 = vector.load %arg1[%c3, %c0_9, %c0_10] : memref<4x8x256xf32, #tpu.memory_space<vmem>>, vector<1x8x256xf32>
    %18 = vector.shape_cast %17 : vector<1x8x256xf32> to vector<8x256xf32>
    %c3_11 = arith.constant 3 : index
    %19 = memref.load %arg2[%c3_11] : memref<4xf32, #tpu.memory_space<smem>>
    %20 = vector.broadcast %19 : f32 to vector<8x256xf32>
    %21 = arith.mulf %18, %20 : vector<8x256xf32>
    %22 = arith.addf %16, %21 : vector<8x256xf32>
    %c0_12 = arith.constant 0 : index
    %23 = memref.load %arg3[%c0_12] : memref<1xf32, #tpu.memory_space<smem>>
    %24 = vector.broadcast %23 : f32 to vector<8x256xf32>
    %25 = arith.addf %22, %24 : vector<8x256xf32>
    %26 = math.absf %25 : vector<8x256xf32>
    %27 = tpu.bitcast %26 : vector<8x256xf32> -> vector<8x256xi32>
    %c0_i32 = arith.constant 0 : i32
    %28 = vector.broadcast %c0_i32 : i32 to vector<8x1xi32>
    %cst = arith.constant 2.500000e+01 : f32
    %c0_i32_13 = arith.constant 0 : i32
    %c30_i32 = arith.constant 30 : i32
    %29 = arith.subi %c30_i32, %c0_i32_13 : i32
    %c1_i32 = arith.constant 1 : i32
    %30 = arith.shli %c1_i32, %29 : i32
    %31 = vector.broadcast %30 : i32 to vector<8x1xi32>
    %32 = arith.ori %28, %31 : vector<8x1xi32>
    %33 = vector.broadcast %32 : vector<8x1xi32> to vector<8x256xi32>
    %34 = arith.cmpi sge, %27, %33 : vector<8x256xi32>
    %cst_14 = arith.constant 1.000000e+00 : f32
    %cst_15 = arith.constant 0.000000e+00 : f32
    %35 = vector.broadcast %cst_14 : f32 to vector<8x256xf32>
    %36 = vector.broadcast %cst_15 : f32 to vector<8x256xf32>
    %37 = arith.select %34, %35, %36 : vector<8x256xi1>, vector<8x256xf32>
    %cst_16 = arith.constant dense<0.000000e+00> : vector<8xf32>
    %38 = vector.multi_reduction <add>, %37, %cst_16 [1] : vector<8x256xf32> to vector<8xf32>
    %39 = vector.shape_cast %38 : vector<8xf32> to vector<8x1xf32>
    %40 = vector.broadcast %cst : f32 to vector<8x1xf32>
    %41 = arith.cmpf oge, %39, %40 : vector<8x1xf32>
    %42 = arith.select %41, %32, %28 : vector<8x1xi1>, vector<8x1xi32>
    %c1_i32_17 = arith.constant 1 : i32
    %c30_i32_18 = arith.constant 30 : i32
    %43 = arith.subi %c30_i32_18, %c1_i32_17 : i32
    %c1_i32_19 = arith.constant 1 : i32
    %44 = arith.shli %c1_i32_19, %43 : i32
    %45 = vector.broadcast %44 : i32 to vector<8x1xi32>
    %46 = arith.ori %42, %45 : vector<8x1xi32>
    %47 = vector.broadcast %46 : vector<8x1xi32> to vector<8x256xi32>
    %48 = arith.cmpi sge, %27, %47 : vector<8x256xi32>
    %cst_20 = arith.constant 1.000000e+00 : f32
    %cst_21 = arith.constant 0.000000e+00 : f32
    %49 = vector.broadcast %cst_20 : f32 to vector<8x256xf32>
    %50 = vector.broadcast %cst_21 : f32 to vector<8x256xf32>
    %51 = arith.select %48, %49, %50 : vector<8x256xi1>, vector<8x256xf32>
    %cst_22 = arith.constant dense<0.000000e+00> : vector<8xf32>
    %52 = vector.multi_reduction <add>, %51, %cst_22 [1] : vector<8x256xf32> to vector<8xf32>
    %53 = vector.shape_cast %52 : vector<8xf32> to vector<8x1xf32>
    %54 = vector.broadcast %cst : f32 to vector<8x1xf32>
    %55 = arith.cmpf oge, %53, %54 : vector<8x1xf32>
    %56 = arith.select %55, %46, %42 : vector<8x1xi1>, vector<8x1xi32>
    %c2_i32 = arith.constant 2 : i32
    %c30_i32_23 = arith.constant 30 : i32
    %57 = arith.subi %c30_i32_23, %c2_i32 : i32
    %c1_i32_24 = arith.constant 1 : i32
    %58 = arith.shli %c1_i32_24, %57 : i32
    %59 = vector.broadcast %58 : i32 to vector<8x1xi32>
    %60 = arith.ori %56, %59 : vector<8x1xi32>
    %61 = vector.broadcast %60 : vector<8x1xi32> to vector<8x256xi32>
    %62 = arith.cmpi sge, %27, %61 : vector<8x256xi32>
    %cst_25 = arith.constant 1.000000e+00 : f32
    %cst_26 = arith.constant 0.000000e+00 : f32
    %63 = vector.broadcast %cst_25 : f32 to vector<8x256xf32>
    %64 = vector.broadcast %cst_26 : f32 to vector<8x256xf32>
    %65 = arith.select %62, %63, %64 : vector<8x256xi1>, vector<8x256xf32>
    %cst_27 = arith.constant dense<0.000000e+00> : vector<8xf32>
    %66 = vector.multi_reduction <add>, %65, %cst_27 [1] : vector<8x256xf32> to vector<8xf32>
    %67 = vector.shape_cast %66 : vector<8xf32> to vector<8x1xf32>
    %68 = vector.broadcast %cst : f32 to vector<8x1xf32>
    %69 = arith.cmpf oge, %67, %68 : vector<8x1xf32>
    %70 = arith.select %69, %60, %56 : vector<8x1xi1>, vector<8x1xi32>
    %c3_i32 = arith.constant 3 : i32
    %c30_i32_28 = arith.constant 30 : i32
    %71 = arith.subi %c30_i32_28, %c3_i32 : i32
    %c1_i32_29 = arith.constant 1 : i32
    %72 = arith.shli %c1_i32_29, %71 : i32
    %73 = vector.broadcast %72 : i32 to vector<8x1xi32>
    %74 = arith.ori %70, %73 : vector<8x1xi32>
    %75 = vector.broadcast %74 : vector<8x1xi32> to vector<8x256xi32>
    %76 = arith.cmpi sge, %27, %75 : vector<8x256xi32>
    %cst_30 = arith.constant 1.000000e+00 : f32
    %cst_31 = arith.constant 0.000000e+00 : f32
    %77 = vector.broadcast %cst_30 : f32 to vector<8x256xf32>
    %78 = vector.broadcast %cst_31 : f32 to vector<8x256xf32>
    %79 = arith.select %76, %77, %78 : vector<8x256xi1>, vector<8x256xf32>
    %cst_32 = arith.constant dense<0.000000e+00> : vector<8xf32>
    %80 = vector.multi_reduction <add>, %79, %cst_32 [1] : vector<8x256xf32> to vector<8xf32>
    %81 = vector.shape_cast %80 : vector<8xf32> to vector<8x1xf32>
    %82 = vector.broadcast %cst : f32 to vector<8x1xf32>
    %83 = arith.cmpf oge, %81, %82 : vector<8x1xf32>
    %84 = arith.select %83, %74, %70 : vector<8x1xi1>, vector<8x1xi32>
    %c4_i32 = arith.constant 4 : i32
    %c30_i32_33 = arith.constant 30 : i32
    %85 = arith.subi %c30_i32_33, %c4_i32 : i32
    %c1_i32_34 = arith.constant 1 : i32
    %86 = arith.shli %c1_i32_34, %85 : i32
    %87 = vector.broadcast %86 : i32 to vector<8x1xi32>
    %88 = arith.ori %84, %87 : vector<8x1xi32>
    %89 = vector.broadcast %88 : vector<8x1xi32> to vector<8x256xi32>
    %90 = arith.cmpi sge, %27, %89 : vector<8x256xi32>
    %cst_35 = arith.constant 1.000000e+00 : f32
    %cst_36 = arith.constant 0.000000e+00 : f32
    %91 = vector.broadcast %cst_35 : f32 to vector<8x256xf32>
    %92 = vector.broadcast %cst_36 : f32 to vector<8x256xf32>
    %93 = arith.select %90, %91, %92 : vector<8x256xi1>, vector<8x256xf32>
    %cst_37 = arith.constant dense<0.000000e+00> : vector<8xf32>
    %94 = vector.multi_reduction <add>, %93, %cst_37 [1] : vector<8x256xf32> to vector<8xf32>
    %95 = vector.shape_cast %94 : vector<8xf32> to vector<8x1xf32>
    %96 = vector.broadcast %cst : f32 to vector<8x1xf32>
    %97 = arith.cmpf oge, %95, %96 : vector<8x1xf32>
    %98 = arith.select %97, %88, %84 : vector<8x1xi1>, vector<8x1xi32>
    %c5_i32 = arith.constant 5 : i32
    %c30_i32_38 = arith.constant 30 : i32
    %99 = arith.subi %c30_i32_38, %c5_i32 : i32
    %c1_i32_39 = arith.constant 1 : i32
    %100 = arith.shli %c1_i32_39, %99 : i32
    %101 = vector.broadcast %100 : i32 to vector<8x1xi32>
    %102 = arith.ori %98, %101 : vector<8x1xi32>
    %103 = vector.broadcast %102 : vector<8x1xi32> to vector<8x256xi32>
    %104 = arith.cmpi sge, %27, %103 : vector<8x256xi32>
    %cst_40 = arith.constant 1.000000e+00 : f32
    %cst_41 = arith.constant 0.000000e+00 : f32
    %105 = vector.broadcast %cst_40 : f32 to vector<8x256xf32>
    %106 = vector.broadcast %cst_41 : f32 to vector<8x256xf32>
    %107 = arith.select %104, %105, %106 : vector<8x256xi1>, vector<8x256xf32>
    %cst_42 = arith.constant dense<0.000000e+00> : vector<8xf32>
    %108 = vector.multi_reduction <add>, %107, %cst_42 [1] : vector<8x256xf32> to vector<8xf32>
    %109 = vector.shape_cast %108 : vector<8xf32> to vector<8x1xf32>
    %110 = vector.broadcast %cst : f32 to vector<8x1xf32>
    %111 = arith.cmpf oge, %109, %110 : vector<8x1xf32>
    %112 = arith.select %111, %102, %98 : vector<8x1xi1>, vector<8x1xi32>
    %c6_i32 = arith.constant 6 : i32
    %c30_i32_43 = arith.constant 30 : i32
    %113 = arith.subi %c30_i32_43, %c6_i32 : i32
    %c1_i32_44 = arith.constant 1 : i32
    %114 = arith.shli %c1_i32_44, %113 : i32
    %115 = vector.broadcast %114 : i32 to vector<8x1xi32>
    %116 = arith.ori %112, %115 : vector<8x1xi32>
    %117 = vector.broadcast %116 : vector<8x1xi32> to vector<8x256xi32>
    %118 = arith.cmpi sge, %27, %117 : vector<8x256xi32>
    %cst_45 = arith.constant 1.000000e+00 : f32
    %cst_46 = arith.constant 0.000000e+00 : f32
    %119 = vector.broadcast %cst_45 : f32 to vector<8x256xf32>
    %120 = vector.broadcast %cst_46 : f32 to vector<8x256xf32>
    %121 = arith.select %118, %119, %120 : vector<8x256xi1>, vector<8x256xf32>
    %cst_47 = arith.constant dense<0.000000e+00> : vector<8xf32>
    %122 = vector.multi_reduction <add>, %121, %cst_47 [1] : vector<8x256xf32> to vector<8xf32>
    %123 = vector.shape_cast %122 : vector<8xf32> to vector<8x1xf32>
    %124 = vector.broadcast %cst : f32 to vector<8x1xf32>
    %125 = arith.cmpf oge, %123, %124 : vector<8x1xf32>
    %126 = arith.select %125, %116, %112 : vector<8x1xi1>, vector<8x1xi32>
    %c7_i32 = arith.constant 7 : i32
    %c30_i32_48 = arith.constant 30 : i32
    %127 = arith.subi %c30_i32_48, %c7_i32 : i32
    %c1_i32_49 = arith.constant 1 : i32
    %128 = arith.shli %c1_i32_49, %127 : i32
    %129 = vector.broadcast %128 : i32 to vector<8x1xi32>
    %130 = arith.ori %126, %129 : vector<8x1xi32>
    %131 = vector.broadcast %130 : vector<8x1xi32> to vector<8x256xi32>
    %132 = arith.cmpi sge, %27, %131 : vector<8x256xi32>
    %cst_50 = arith.constant 1.000000e+00 : f32
    %cst_51 = arith.constant 0.000000e+00 : f32
    %133 = vector.broadcast %cst_50 : f32 to vector<8x256xf32>
    %134 = vector.broadcast %cst_51 : f32 to vector<8x256xf32>
    %135 = arith.select %132, %133, %134 : vector<8x256xi1>, vector<8x256xf32>
    %cst_52 = arith.constant dense<0.000000e+00> : vector<8xf32>
    %136 = vector.multi_reduction <add>, %135, %cst_52 [1] : vector<8x256xf32> to vector<8xf32>
    %137 = vector.shape_cast %136 : vector<8xf32> to vector<8x1xf32>
    %138 = vector.broadcast %cst : f32 to vector<8x1xf32>
    %139 = arith.cmpf oge, %137, %138 : vector<8x1xf32>
    %140 = arith.select %139, %130, %126 : vector<8x1xi1>, vector<8x1xi32>
    %c8_i32 = arith.constant 8 : i32
    %c30_i32_53 = arith.constant 30 : i32
    %141 = arith.subi %c30_i32_53, %c8_i32 : i32
    %c1_i32_54 = arith.constant 1 : i32
    %142 = arith.shli %c1_i32_54, %141 : i32
    %143 = vector.broadcast %142 : i32 to vector<8x1xi32>
    %144 = arith.ori %140, %143 : vector<8x1xi32>
    %145 = vector.broadcast %144 : vector<8x1xi32> to vector<8x256xi32>
    %146 = arith.cmpi sge, %27, %145 : vector<8x256xi32>
    %cst_55 = arith.constant 1.000000e+00 : f32
    %cst_56 = arith.constant 0.000000e+00 : f32
    %147 = vector.broadcast %cst_55 : f32 to vector<8x256xf32>
    %148 = vector.broadcast %cst_56 : f32 to vector<8x256xf32>
    %149 = arith.select %146, %147, %148 : vector<8x256xi1>, vector<8x256xf32>
    %cst_57 = arith.constant dense<0.000000e+00> : vector<8xf32>
    %150 = vector.multi_reduction <add>, %149, %cst_57 [1] : vector<8x256xf32> to vector<8xf32>
    %151 = vector.shape_cast %150 : vector<8xf32> to vector<8x1xf32>
    %152 = vector.broadcast %cst : f32 to vector<8x1xf32>
    %153 = arith.cmpf oge, %151, %152 : vector<8x1xf32>
    %154 = arith.select %153, %144, %140 : vector<8x1xi1>, vector<8x1xi32>
    %c9_i32 = arith.constant 9 : i32
    %c30_i32_58 = arith.constant 30 : i32
    %155 = arith.subi %c30_i32_58, %c9_i32 : i32
    %c1_i32_59 = arith.constant 1 : i32
    %156 = arith.shli %c1_i32_59, %155 : i32
    %157 = vector.broadcast %156 : i32 to vector<8x1xi32>
    %158 = arith.ori %154, %157 : vector<8x1xi32>
    %159 = vector.broadcast %158 : vector<8x1xi32> to vector<8x256xi32>
    %160 = arith.cmpi sge, %27, %159 : vector<8x256xi32>
    %cst_60 = arith.constant 1.000000e+00 : f32
    %cst_61 = arith.constant 0.000000e+00 : f32
    %161 = vector.broadcast %cst_60 : f32 to vector<8x256xf32>
    %162 = vector.broadcast %cst_61 : f32 to vector<8x256xf32>
    %163 = arith.select %160, %161, %162 : vector<8x256xi1>, vector<8x256xf32>
    %cst_62 = arith.constant dense<0.000000e+00> : vector<8xf32>
    %164 = vector.multi_reduction <add>, %163, %cst_62 [1] : vector<8x256xf32> to vector<8xf32>
    %165 = vector.shape_cast %164 : vector<8xf32> to vector<8x1xf32>
    %166 = vector.broadcast %cst : f32 to vector<8x1xf32>
    %167 = arith.cmpf oge, %165, %166 : vector<8x1xf32>
    %168 = arith.select %167, %158, %154 : vector<8x1xi1>, vector<8x1xi32>
    %c10_i32 = arith.constant 10 : i32
    %c30_i32_63 = arith.constant 30 : i32
    %169 = arith.subi %c30_i32_63, %c10_i32 : i32
    %c1_i32_64 = arith.constant 1 : i32
    %170 = arith.shli %c1_i32_64, %169 : i32
    %171 = vector.broadcast %170 : i32 to vector<8x1xi32>
    %172 = arith.ori %168, %171 : vector<8x1xi32>
    %173 = vector.broadcast %172 : vector<8x1xi32> to vector<8x256xi32>
    %174 = arith.cmpi sge, %27, %173 : vector<8x256xi32>
    %cst_65 = arith.constant 1.000000e+00 : f32
    %cst_66 = arith.constant 0.000000e+00 : f32
    %175 = vector.broadcast %cst_65 : f32 to vector<8x256xf32>
    %176 = vector.broadcast %cst_66 : f32 to vector<8x256xf32>
    %177 = arith.select %174, %175, %176 : vector<8x256xi1>, vector<8x256xf32>
    %cst_67 = arith.constant dense<0.000000e+00> : vector<8xf32>
    %178 = vector.multi_reduction <add>, %177, %cst_67 [1] : vector<8x256xf32> to vector<8xf32>
    %179 = vector.shape_cast %178 : vector<8xf32> to vector<8x1xf32>
    %180 = vector.broadcast %cst : f32 to vector<8x1xf32>
    %181 = arith.cmpf oge, %179, %180 : vector<8x1xf32>
    %182 = arith.select %181, %172, %168 : vector<8x1xi1>, vector<8x1xi32>
    %c11_i32 = arith.constant 11 : i32
    %c30_i32_68 = arith.constant 30 : i32
    %183 = arith.subi %c30_i32_68, %c11_i32 : i32
    %c1_i32_69 = arith.constant 1 : i32
    %184 = arith.shli %c1_i32_69, %183 : i32
    %185 = vector.broadcast %184 : i32 to vector<8x1xi32>
    %186 = arith.ori %182, %185 : vector<8x1xi32>
    %187 = vector.broadcast %186 : vector<8x1xi32> to vector<8x256xi32>
    %188 = arith.cmpi sge, %27, %187 : vector<8x256xi32>
    %cst_70 = arith.constant 1.000000e+00 : f32
    %cst_71 = arith.constant 0.000000e+00 : f32
    %189 = vector.broadcast %cst_70 : f32 to vector<8x256xf32>
    %190 = vector.broadcast %cst_71 : f32 to vector<8x256xf32>
    %191 = arith.select %188, %189, %190 : vector<8x256xi1>, vector<8x256xf32>
    %cst_72 = arith.constant dense<0.000000e+00> : vector<8xf32>
    %192 = vector.multi_reduction <add>, %191, %cst_72 [1] : vector<8x256xf32> to vector<8xf32>
    %193 = vector.shape_cast %192 : vector<8xf32> to vector<8x1xf32>
    %194 = vector.broadcast %cst : f32 to vector<8x1xf32>
    %195 = arith.cmpf oge, %193, %194 : vector<8x1xf32>
    %196 = arith.select %195, %186, %182 : vector<8x1xi1>, vector<8x1xi32>
    %c12_i32 = arith.constant 12 : i32
    %c30_i32_73 = arith.constant 30 : i32
    %197 = arith.subi %c30_i32_73, %c12_i32 : i32
    %c1_i32_74 = arith.constant 1 : i32
    %198 = arith.shli %c1_i32_74, %197 : i32
    %199 = vector.broadcast %198 : i32 to vector<8x1xi32>
    %200 = arith.ori %196, %199 : vector<8x1xi32>
    %201 = vector.broadcast %200 : vector<8x1xi32> to vector<8x256xi32>
    %202 = arith.cmpi sge, %27, %201 : vector<8x256xi32>
    %cst_75 = arith.constant 1.000000e+00 : f32
    %cst_76 = arith.constant 0.000000e+00 : f32
    %203 = vector.broadcast %cst_75 : f32 to vector<8x256xf32>
    %204 = vector.broadcast %cst_76 : f32 to vector<8x256xf32>
    %205 = arith.select %202, %203, %204 : vector<8x256xi1>, vector<8x256xf32>
    %cst_77 = arith.constant dense<0.000000e+00> : vector<8xf32>
    %206 = vector.multi_reduction <add>, %205, %cst_77 [1] : vector<8x256xf32> to vector<8xf32>
    %207 = vector.shape_cast %206 : vector<8xf32> to vector<8x1xf32>
    %208 = vector.broadcast %cst : f32 to vector<8x1xf32>
    %209 = arith.cmpf oge, %207, %208 : vector<8x1xf32>
    %210 = arith.select %209, %200, %196 : vector<8x1xi1>, vector<8x1xi32>
    %c13_i32 = arith.constant 13 : i32
    %c30_i32_78 = arith.constant 30 : i32
    %211 = arith.subi %c30_i32_78, %c13_i32 : i32
    %c1_i32_79 = arith.constant 1 : i32
    %212 = arith.shli %c1_i32_79, %211 : i32
    %213 = vector.broadcast %212 : i32 to vector<8x1xi32>
    %214 = arith.ori %210, %213 : vector<8x1xi32>
    %215 = vector.broadcast %214 : vector<8x1xi32> to vector<8x256xi32>
    %216 = arith.cmpi sge, %27, %215 : vector<8x256xi32>
    %cst_80 = arith.constant 1.000000e+00 : f32
    %cst_81 = arith.constant 0.000000e+00 : f32
    %217 = vector.broadcast %cst_80 : f32 to vector<8x256xf32>
    %218 = vector.broadcast %cst_81 : f32 to vector<8x256xf32>
    %219 = arith.select %216, %217, %218 : vector<8x256xi1>, vector<8x256xf32>
    %cst_82 = arith.constant dense<0.000000e+00> : vector<8xf32>
    %220 = vector.multi_reduction <add>, %219, %cst_82 [1] : vector<8x256xf32> to vector<8xf32>
    %221 = vector.shape_cast %220 : vector<8xf32> to vector<8x1xf32>
    %222 = vector.broadcast %cst : f32 to vector<8x1xf32>
    %223 = arith.cmpf oge, %221, %222 : vector<8x1xf32>
    %224 = arith.select %223, %214, %210 : vector<8x1xi1>, vector<8x1xi32>
    %c14_i32 = arith.constant 14 : i32
    %c30_i32_83 = arith.constant 30 : i32
    %225 = arith.subi %c30_i32_83, %c14_i32 : i32
    %c1_i32_84 = arith.constant 1 : i32
    %226 = arith.shli %c1_i32_84, %225 : i32
    %227 = vector.broadcast %226 : i32 to vector<8x1xi32>
    %228 = arith.ori %224, %227 : vector<8x1xi32>
    %229 = vector.broadcast %228 : vector<8x1xi32> to vector<8x256xi32>
    %230 = arith.cmpi sge, %27, %229 : vector<8x256xi32>
    %cst_85 = arith.constant 1.000000e+00 : f32
    %cst_86 = arith.constant 0.000000e+00 : f32
    %231 = vector.broadcast %cst_85 : f32 to vector<8x256xf32>
    %232 = vector.broadcast %cst_86 : f32 to vector<8x256xf32>
    %233 = arith.select %230, %231, %232 : vector<8x256xi1>, vector<8x256xf32>
    %cst_87 = arith.constant dense<0.000000e+00> : vector<8xf32>
    %234 = vector.multi_reduction <add>, %233, %cst_87 [1] : vector<8x256xf32> to vector<8xf32>
    %235 = vector.shape_cast %234 : vector<8xf32> to vector<8x1xf32>
    %236 = vector.broadcast %cst : f32 to vector<8x1xf32>
    %237 = arith.cmpf oge, %235, %236 : vector<8x1xf32>
    %238 = arith.select %237, %228, %224 : vector<8x1xi1>, vector<8x1xi32>
    %c15_i32 = arith.constant 15 : i32
    %c30_i32_88 = arith.constant 30 : i32
    %239 = arith.subi %c30_i32_88, %c15_i32 : i32
    %c1_i32_89 = arith.constant 1 : i32
    %240 = arith.shli %c1_i32_89, %239 : i32
    %241 = vector.broadcast %240 : i32 to vector<8x1xi32>
    %242 = arith.ori %238, %241 : vector<8x1xi32>
    %243 = vector.broadcast %242 : vector<8x1xi32> to vector<8x256xi32>
    %244 = arith.cmpi sge, %27, %243 : vector<8x256xi32>
    %cst_90 = arith.constant 1.000000e+00 : f32
    %cst_91 = arith.constant 0.000000e+00 : f32
    %245 = vector.broadcast %cst_90 : f32 to vector<8x256xf32>
    %246 = vector.broadcast %cst_91 : f32 to vector<8x256xf32>
    %247 = arith.select %244, %245, %246 : vector<8x256xi1>, vector<8x256xf32>
    %cst_92 = arith.constant dense<0.000000e+00> : vector<8xf32>
    %248 = vector.multi_reduction <add>, %247, %cst_92 [1] : vector<8x256xf32> to vector<8xf32>
    %249 = vector.shape_cast %248 : vector<8xf32> to vector<8x1xf32>
    %250 = vector.broadcast %cst : f32 to vector<8x1xf32>
    %251 = arith.cmpf oge, %249, %250 : vector<8x1xf32>
    %252 = arith.select %251, %242, %238 : vector<8x1xi1>, vector<8x1xi32>
    %c16_i32 = arith.constant 16 : i32
    %c30_i32_93 = arith.constant 30 : i32
    %253 = arith.subi %c30_i32_93, %c16_i32 : i32
    %c1_i32_94 = arith.constant 1 : i32
    %254 = arith.shli %c1_i32_94, %253 : i32
    %255 = vector.broadcast %254 : i32 to vector<8x1xi32>
    %256 = arith.ori %252, %255 : vector<8x1xi32>
    %257 = vector.broadcast %256 : vector<8x1xi32> to vector<8x256xi32>
    %258 = arith.cmpi sge, %27, %257 : vector<8x256xi32>
    %cst_95 = arith.constant 1.000000e+00 : f32
    %cst_96 = arith.constant 0.000000e+00 : f32
    %259 = vector.broadcast %cst_95 : f32 to vector<8x256xf32>
    %260 = vector.broadcast %cst_96 : f32 to vector<8x256xf32>
    %261 = arith.select %258, %259, %260 : vector<8x256xi1>, vector<8x256xf32>
    %cst_97 = arith.constant dense<0.000000e+00> : vector<8xf32>
    %262 = vector.multi_reduction <add>, %261, %cst_97 [1] : vector<8x256xf32> to vector<8xf32>
    %263 = vector.shape_cast %262 : vector<8xf32> to vector<8x1xf32>
    %264 = vector.broadcast %cst : f32 to vector<8x1xf32>
    %265 = arith.cmpf oge, %263, %264 : vector<8x1xf32>
    %266 = arith.select %265, %256, %252 : vector<8x1xi1>, vector<8x1xi32>
    %c17_i32 = arith.constant 17 : i32
    %c30_i32_98 = arith.constant 30 : i32
    %267 = arith.subi %c30_i32_98, %c17_i32 : i32
    %c1_i32_99 = arith.constant 1 : i32
    %268 = arith.shli %c1_i32_99, %267 : i32
    %269 = vector.broadcast %268 : i32 to vector<8x1xi32>
    %270 = arith.ori %266, %269 : vector<8x1xi32>
    %271 = vector.broadcast %270 : vector<8x1xi32> to vector<8x256xi32>
    %272 = arith.cmpi sge, %27, %271 : vector<8x256xi32>
    %cst_100 = arith.constant 1.000000e+00 : f32
    %cst_101 = arith.constant 0.000000e+00 : f32
    %273 = vector.broadcast %cst_100 : f32 to vector<8x256xf32>
    %274 = vector.broadcast %cst_101 : f32 to vector<8x256xf32>
    %275 = arith.select %272, %273, %274 : vector<8x256xi1>, vector<8x256xf32>
    %cst_102 = arith.constant dense<0.000000e+00> : vector<8xf32>
    %276 = vector.multi_reduction <add>, %275, %cst_102 [1] : vector<8x256xf32> to vector<8xf32>
    %277 = vector.shape_cast %276 : vector<8xf32> to vector<8x1xf32>
    %278 = vector.broadcast %cst : f32 to vector<8x1xf32>
    %279 = arith.cmpf oge, %277, %278 : vector<8x1xf32>
    %280 = arith.select %279, %270, %266 : vector<8x1xi1>, vector<8x1xi32>
    %c18_i32 = arith.constant 18 : i32
    %c30_i32_103 = arith.constant 30 : i32
    %281 = arith.subi %c30_i32_103, %c18_i32 : i32
    %c1_i32_104 = arith.constant 1 : i32
    %282 = arith.shli %c1_i32_104, %281 : i32
    %283 = vector.broadcast %282 : i32 to vector<8x1xi32>
    %284 = arith.ori %280, %283 : vector<8x1xi32>
    %285 = vector.broadcast %284 : vector<8x1xi32> to vector<8x256xi32>
    %286 = arith.cmpi sge, %27, %285 : vector<8x256xi32>
    %cst_105 = arith.constant 1.000000e+00 : f32
    %cst_106 = arith.constant 0.000000e+00 : f32
    %287 = vector.broadcast %cst_105 : f32 to vector<8x256xf32>
    %288 = vector.broadcast %cst_106 : f32 to vector<8x256xf32>
    %289 = arith.select %286, %287, %288 : vector<8x256xi1>, vector<8x256xf32>
    %cst_107 = arith.constant dense<0.000000e+00> : vector<8xf32>
    %290 = vector.multi_reduction <add>, %289, %cst_107 [1] : vector<8x256xf32> to vector<8xf32>
    %291 = vector.shape_cast %290 : vector<8xf32> to vector<8x1xf32>
    %292 = vector.broadcast %cst : f32 to vector<8x1xf32>
    %293 = arith.cmpf oge, %291, %292 : vector<8x1xf32>
    %294 = arith.select %293, %284, %280 : vector<8x1xi1>, vector<8x1xi32>
    %c19_i32 = arith.constant 19 : i32
    %c30_i32_108 = arith.constant 30 : i32
    %295 = arith.subi %c30_i32_108, %c19_i32 : i32
    %c1_i32_109 = arith.constant 1 : i32
    %296 = arith.shli %c1_i32_109, %295 : i32
    %297 = vector.broadcast %296 : i32 to vector<8x1xi32>
    %298 = arith.ori %294, %297 : vector<8x1xi32>
    %299 = vector.broadcast %298 : vector<8x1xi32> to vector<8x256xi32>
    %300 = arith.cmpi sge, %27, %299 : vector<8x256xi32>
    %cst_110 = arith.constant 1.000000e+00 : f32
    %cst_111 = arith.constant 0.000000e+00 : f32
    %301 = vector.broadcast %cst_110 : f32 to vector<8x256xf32>
    %302 = vector.broadcast %cst_111 : f32 to vector<8x256xf32>
    %303 = arith.select %300, %301, %302 : vector<8x256xi1>, vector<8x256xf32>
    %cst_112 = arith.constant dense<0.000000e+00> : vector<8xf32>
    %304 = vector.multi_reduction <add>, %303, %cst_112 [1] : vector<8x256xf32> to vector<8xf32>
    %305 = vector.shape_cast %304 : vector<8xf32> to vector<8x1xf32>
    %306 = vector.broadcast %cst : f32 to vector<8x1xf32>
    %307 = arith.cmpf oge, %305, %306 : vector<8x1xf32>
    %308 = arith.select %307, %298, %294 : vector<8x1xi1>, vector<8x1xi32>
    %c20_i32 = arith.constant 20 : i32
    %c30_i32_113 = arith.constant 30 : i32
    %309 = arith.subi %c30_i32_113, %c20_i32 : i32
    %c1_i32_114 = arith.constant 1 : i32
    %310 = arith.shli %c1_i32_114, %309 : i32
    %311 = vector.broadcast %310 : i32 to vector<8x1xi32>
    %312 = arith.ori %308, %311 : vector<8x1xi32>
    %313 = vector.broadcast %312 : vector<8x1xi32> to vector<8x256xi32>
    %314 = arith.cmpi sge, %27, %313 : vector<8x256xi32>
    %cst_115 = arith.constant 1.000000e+00 : f32
    %cst_116 = arith.constant 0.000000e+00 : f32
    %315 = vector.broadcast %cst_115 : f32 to vector<8x256xf32>
    %316 = vector.broadcast %cst_116 : f32 to vector<8x256xf32>
    %317 = arith.select %314, %315, %316 : vector<8x256xi1>, vector<8x256xf32>
    %cst_117 = arith.constant dense<0.000000e+00> : vector<8xf32>
    %318 = vector.multi_reduction <add>, %317, %cst_117 [1] : vector<8x256xf32> to vector<8xf32>
    %319 = vector.shape_cast %318 : vector<8xf32> to vector<8x1xf32>
    %320 = vector.broadcast %cst : f32 to vector<8x1xf32>
    %321 = arith.cmpf oge, %319, %320 : vector<8x1xf32>
    %322 = arith.select %321, %312, %308 : vector<8x1xi1>, vector<8x1xi32>
    %c21_i32 = arith.constant 21 : i32
    %c30_i32_118 = arith.constant 30 : i32
    %323 = arith.subi %c30_i32_118, %c21_i32 : i32
    %c1_i32_119 = arith.constant 1 : i32
    %324 = arith.shli %c1_i32_119, %323 : i32
    %325 = vector.broadcast %324 : i32 to vector<8x1xi32>
    %326 = arith.ori %322, %325 : vector<8x1xi32>
    %327 = vector.broadcast %326 : vector<8x1xi32> to vector<8x256xi32>
    %328 = arith.cmpi sge, %27, %327 : vector<8x256xi32>
    %cst_120 = arith.constant 1.000000e+00 : f32
    %cst_121 = arith.constant 0.000000e+00 : f32
    %329 = vector.broadcast %cst_120 : f32 to vector<8x256xf32>
    %330 = vector.broadcast %cst_121 : f32 to vector<8x256xf32>
    %331 = arith.select %328, %329, %330 : vector<8x256xi1>, vector<8x256xf32>
    %cst_122 = arith.constant dense<0.000000e+00> : vector<8xf32>
    %332 = vector.multi_reduction <add>, %331, %cst_122 [1] : vector<8x256xf32> to vector<8xf32>
    %333 = vector.shape_cast %332 : vector<8xf32> to vector<8x1xf32>
    %334 = vector.broadcast %cst : f32 to vector<8x1xf32>
    %335 = arith.cmpf oge, %333, %334 : vector<8x1xf32>
    %336 = arith.select %335, %326, %322 : vector<8x1xi1>, vector<8x1xi32>
    %c22_i32 = arith.constant 22 : i32
    %c30_i32_123 = arith.constant 30 : i32
    %337 = arith.subi %c30_i32_123, %c22_i32 : i32
    %c1_i32_124 = arith.constant 1 : i32
    %338 = arith.shli %c1_i32_124, %337 : i32
    %339 = vector.broadcast %338 : i32 to vector<8x1xi32>
    %340 = arith.ori %336, %339 : vector<8x1xi32>
    %341 = vector.broadcast %340 : vector<8x1xi32> to vector<8x256xi32>
    %342 = arith.cmpi sge, %27, %341 : vector<8x256xi32>
    %cst_125 = arith.constant 1.000000e+00 : f32
    %cst_126 = arith.constant 0.000000e+00 : f32
    %343 = vector.broadcast %cst_125 : f32 to vector<8x256xf32>
    %344 = vector.broadcast %cst_126 : f32 to vector<8x256xf32>
    %345 = arith.select %342, %343, %344 : vector<8x256xi1>, vector<8x256xf32>
    %cst_127 = arith.constant dense<0.000000e+00> : vector<8xf32>
    %346 = vector.multi_reduction <add>, %345, %cst_127 [1] : vector<8x256xf32> to vector<8xf32>
    %347 = vector.shape_cast %346 : vector<8xf32> to vector<8x1xf32>
    %348 = vector.broadcast %cst : f32 to vector<8x1xf32>
    %349 = arith.cmpf oge, %347, %348 : vector<8x1xf32>
    %350 = arith.select %349, %340, %336 : vector<8x1xi1>, vector<8x1xi32>
    %c23_i32 = arith.constant 23 : i32
    %c30_i32_128 = arith.constant 30 : i32
    %351 = arith.subi %c30_i32_128, %c23_i32 : i32
    %c1_i32_129 = arith.constant 1 : i32
    %352 = arith.shli %c1_i32_129, %351 : i32
    %353 = vector.broadcast %352 : i32 to vector<8x1xi32>
    %354 = arith.ori %350, %353 : vector<8x1xi32>
    %355 = vector.broadcast %354 : vector<8x1xi32> to vector<8x256xi32>
    %356 = arith.cmpi sge, %27, %355 : vector<8x256xi32>
    %cst_130 = arith.constant 1.000000e+00 : f32
    %cst_131 = arith.constant 0.000000e+00 : f32
    %357 = vector.broadcast %cst_130 : f32 to vector<8x256xf32>
    %358 = vector.broadcast %cst_131 : f32 to vector<8x256xf32>
    %359 = arith.select %356, %357, %358 : vector<8x256xi1>, vector<8x256xf32>
    %cst_132 = arith.constant dense<0.000000e+00> : vector<8xf32>
    %360 = vector.multi_reduction <add>, %359, %cst_132 [1] : vector<8x256xf32> to vector<8xf32>
    %361 = vector.shape_cast %360 : vector<8xf32> to vector<8x1xf32>
    %362 = vector.broadcast %cst : f32 to vector<8x1xf32>
    %363 = arith.cmpf oge, %361, %362 : vector<8x1xf32>
    %364 = arith.select %363, %354, %350 : vector<8x1xi1>, vector<8x1xi32>
    %c24_i32 = arith.constant 24 : i32
    %c30_i32_133 = arith.constant 30 : i32
    %365 = arith.subi %c30_i32_133, %c24_i32 : i32
    %c1_i32_134 = arith.constant 1 : i32
    %366 = arith.shli %c1_i32_134, %365 : i32
    %367 = vector.broadcast %366 : i32 to vector<8x1xi32>
    %368 = arith.ori %364, %367 : vector<8x1xi32>
    %369 = vector.broadcast %368 : vector<8x1xi32> to vector<8x256xi32>
    %370 = arith.cmpi sge, %27, %369 : vector<8x256xi32>
    %cst_135 = arith.constant 1.000000e+00 : f32
    %cst_136 = arith.constant 0.000000e+00 : f32
    %371 = vector.broadcast %cst_135 : f32 to vector<8x256xf32>
    %372 = vector.broadcast %cst_136 : f32 to vector<8x256xf32>
    %373 = arith.select %370, %371, %372 : vector<8x256xi1>, vector<8x256xf32>
    %cst_137 = arith.constant dense<0.000000e+00> : vector<8xf32>
    %374 = vector.multi_reduction <add>, %373, %cst_137 [1] : vector<8x256xf32> to vector<8xf32>
    %375 = vector.shape_cast %374 : vector<8xf32> to vector<8x1xf32>
    %376 = vector.broadcast %cst : f32 to vector<8x1xf32>
    %377 = arith.cmpf oge, %375, %376 : vector<8x1xf32>
    %378 = arith.select %377, %368, %364 : vector<8x1xi1>, vector<8x1xi32>
    %c25_i32 = arith.constant 25 : i32
    %c30_i32_138 = arith.constant 30 : i32
    %379 = arith.subi %c30_i32_138, %c25_i32 : i32
    %c1_i32_139 = arith.constant 1 : i32
    %380 = arith.shli %c1_i32_139, %379 : i32
    %381 = vector.broadcast %380 : i32 to vector<8x1xi32>
    %382 = arith.ori %378, %381 : vector<8x1xi32>
    %383 = vector.broadcast %382 : vector<8x1xi32> to vector<8x256xi32>
    %384 = arith.cmpi sge, %27, %383 : vector<8x256xi32>
    %cst_140 = arith.constant 1.000000e+00 : f32
    %cst_141 = arith.constant 0.000000e+00 : f32
    %385 = vector.broadcast %cst_140 : f32 to vector<8x256xf32>
    %386 = vector.broadcast %cst_141 : f32 to vector<8x256xf32>
    %387 = arith.select %384, %385, %386 : vector<8x256xi1>, vector<8x256xf32>
    %cst_142 = arith.constant dense<0.000000e+00> : vector<8xf32>
    %388 = vector.multi_reduction <add>, %387, %cst_142 [1] : vector<8x256xf32> to vector<8xf32>
    %389 = vector.shape_cast %388 : vector<8xf32> to vector<8x1xf32>
    %390 = vector.broadcast %cst : f32 to vector<8x1xf32>
    %391 = arith.cmpf oge, %389, %390 : vector<8x1xf32>
    %392 = arith.select %391, %382, %378 : vector<8x1xi1>, vector<8x1xi32>
    %c26_i32 = arith.constant 26 : i32
    %c30_i32_143 = arith.constant 30 : i32
    %393 = arith.subi %c30_i32_143, %c26_i32 : i32
    %c1_i32_144 = arith.constant 1 : i32
    %394 = arith.shli %c1_i32_144, %393 : i32
    %395 = vector.broadcast %394 : i32 to vector<8x1xi32>
    %396 = arith.ori %392, %395 : vector<8x1xi32>
    %397 = vector.broadcast %396 : vector<8x1xi32> to vector<8x256xi32>
    %398 = arith.cmpi sge, %27, %397 : vector<8x256xi32>
    %cst_145 = arith.constant 1.000000e+00 : f32
    %cst_146 = arith.constant 0.000000e+00 : f32
    %399 = vector.broadcast %cst_145 : f32 to vector<8x256xf32>
    %400 = vector.broadcast %cst_146 : f32 to vector<8x256xf32>
    %401 = arith.select %398, %399, %400 : vector<8x256xi1>, vector<8x256xf32>
    %cst_147 = arith.constant dense<0.000000e+00> : vector<8xf32>
    %402 = vector.multi_reduction <add>, %401, %cst_147 [1] : vector<8x256xf32> to vector<8xf32>
    %403 = vector.shape_cast %402 : vector<8xf32> to vector<8x1xf32>
    %404 = vector.broadcast %cst : f32 to vector<8x1xf32>
    %405 = arith.cmpf oge, %403, %404 : vector<8x1xf32>
    %406 = arith.select %405, %396, %392 : vector<8x1xi1>, vector<8x1xi32>
    %c27_i32 = arith.constant 27 : i32
    %c30_i32_148 = arith.constant 30 : i32
    %407 = arith.subi %c30_i32_148, %c27_i32 : i32
    %c1_i32_149 = arith.constant 1 : i32
    %408 = arith.shli %c1_i32_149, %407 : i32
    %409 = vector.broadcast %408 : i32 to vector<8x1xi32>
    %410 = arith.ori %406, %409 : vector<8x1xi32>
    %411 = vector.broadcast %410 : vector<8x1xi32> to vector<8x256xi32>
    %412 = arith.cmpi sge, %27, %411 : vector<8x256xi32>
    %cst_150 = arith.constant 1.000000e+00 : f32
    %cst_151 = arith.constant 0.000000e+00 : f32
    %413 = vector.broadcast %cst_150 : f32 to vector<8x256xf32>
    %414 = vector.broadcast %cst_151 : f32 to vector<8x256xf32>
    %415 = arith.select %412, %413, %414 : vector<8x256xi1>, vector<8x256xf32>
    %cst_152 = arith.constant dense<0.000000e+00> : vector<8xf32>
    %416 = vector.multi_reduction <add>, %415, %cst_152 [1] : vector<8x256xf32> to vector<8xf32>
    %417 = vector.shape_cast %416 : vector<8xf32> to vector<8x1xf32>
    %418 = vector.broadcast %cst : f32 to vector<8x1xf32>
    %419 = arith.cmpf oge, %417, %418 : vector<8x1xf32>
    %420 = arith.select %419, %410, %406 : vector<8x1xi1>, vector<8x1xi32>
    %c28_i32 = arith.constant 28 : i32
    %c30_i32_153 = arith.constant 30 : i32
    %421 = arith.subi %c30_i32_153, %c28_i32 : i32
    %c1_i32_154 = arith.constant 1 : i32
    %422 = arith.shli %c1_i32_154, %421 : i32
    %423 = vector.broadcast %422 : i32 to vector<8x1xi32>
    %424 = arith.ori %420, %423 : vector<8x1xi32>
    %425 = vector.broadcast %424 : vector<8x1xi32> to vector<8x256xi32>
    %426 = arith.cmpi sge, %27, %425 : vector<8x256xi32>
    %cst_155 = arith.constant 1.000000e+00 : f32
    %cst_156 = arith.constant 0.000000e+00 : f32
    %427 = vector.broadcast %cst_155 : f32 to vector<8x256xf32>
    %428 = vector.broadcast %cst_156 : f32 to vector<8x256xf32>
    %429 = arith.select %426, %427, %428 : vector<8x256xi1>, vector<8x256xf32>
    %cst_157 = arith.constant dense<0.000000e+00> : vector<8xf32>
    %430 = vector.multi_reduction <add>, %429, %cst_157 [1] : vector<8x256xf32> to vector<8xf32>
    %431 = vector.shape_cast %430 : vector<8xf32> to vector<8x1xf32>
    %432 = vector.broadcast %cst : f32 to vector<8x1xf32>
    %433 = arith.cmpf oge, %431, %432 : vector<8x1xf32>
    %434 = arith.select %433, %424, %420 : vector<8x1xi1>, vector<8x1xi32>
    %c29_i32 = arith.constant 29 : i32
    %c30_i32_158 = arith.constant 30 : i32
    %435 = arith.subi %c30_i32_158, %c29_i32 : i32
    %c1_i32_159 = arith.constant 1 : i32
    %436 = arith.shli %c1_i32_159, %435 : i32
    %437 = vector.broadcast %436 : i32 to vector<8x1xi32>
    %438 = arith.ori %434, %437 : vector<8x1xi32>
    %439 = vector.broadcast %438 : vector<8x1xi32> to vector<8x256xi32>
    %440 = arith.cmpi sge, %27, %439 : vector<8x256xi32>
    %cst_160 = arith.constant 1.000000e+00 : f32
    %cst_161 = arith.constant 0.000000e+00 : f32
    %441 = vector.broadcast %cst_160 : f32 to vector<8x256xf32>
    %442 = vector.broadcast %cst_161 : f32 to vector<8x256xf32>
    %443 = arith.select %440, %441, %442 : vector<8x256xi1>, vector<8x256xf32>
    %cst_162 = arith.constant dense<0.000000e+00> : vector<8xf32>
    %444 = vector.multi_reduction <add>, %443, %cst_162 [1] : vector<8x256xf32> to vector<8xf32>
    %445 = vector.shape_cast %444 : vector<8xf32> to vector<8x1xf32>
    %446 = vector.broadcast %cst : f32 to vector<8x1xf32>
    %447 = arith.cmpf oge, %445, %446 : vector<8x1xf32>
    %448 = arith.select %447, %438, %434 : vector<8x1xi1>, vector<8x1xi32>
    %c30_i32_163 = arith.constant 30 : i32
    %c30_i32_164 = arith.constant 30 : i32
    %449 = arith.subi %c30_i32_164, %c30_i32_163 : i32
    %c1_i32_165 = arith.constant 1 : i32
    %450 = arith.shli %c1_i32_165, %449 : i32
    %451 = vector.broadcast %450 : i32 to vector<8x1xi32>
    %452 = arith.ori %448, %451 : vector<8x1xi32>
    %453 = vector.broadcast %452 : vector<8x1xi32> to vector<8x256xi32>
    %454 = arith.cmpi sge, %27, %453 : vector<8x256xi32>
    %cst_166 = arith.constant 1.000000e+00 : f32
    %cst_167 = arith.constant 0.000000e+00 : f32
    %455 = vector.broadcast %cst_166 : f32 to vector<8x256xf32>
    %456 = vector.broadcast %cst_167 : f32 to vector<8x256xf32>
    %457 = arith.select %454, %455, %456 : vector<8x256xi1>, vector<8x256xf32>
    %cst_168 = arith.constant dense<0.000000e+00> : vector<8xf32>
    %458 = vector.multi_reduction <add>, %457, %cst_168 [1] : vector<8x256xf32> to vector<8xf32>
    %459 = vector.shape_cast %458 : vector<8xf32> to vector<8x1xf32>
    %460 = vector.broadcast %cst : f32 to vector<8x1xf32>
    %461 = arith.cmpf oge, %459, %460 : vector<8x1xf32>
    %462 = arith.select %461, %452, %448 : vector<8x1xi1>, vector<8x1xi32>
    %c31_i32 = arith.constant 31 : i32
    %463 = tpu.bitcast %27 : vector<8x256xi32> -> vector<8x256xf32>
    %464 = vector.broadcast %462 : vector<8x1xi32> to vector<8x256xi32>
    %465 = arith.cmpi sgt, %27, %464 : vector<8x256xi32>
    %cst_169 = arith.constant 1.000000e+00 : f32
    %cst_170 = arith.constant 0.000000e+00 : f32
    %466 = vector.broadcast %cst_169 : f32 to vector<8x256xf32>
    %467 = vector.broadcast %cst_170 : f32 to vector<8x256xf32>
    %468 = arith.select %465, %466, %467 : vector<8x256xi1>, vector<8x256xf32>
    %cst_171 = arith.constant dense<0.000000e+00> : vector<8xf32>
    %469 = vector.multi_reduction <add>, %468, %cst_171 [1] : vector<8x256xf32> to vector<8xf32>
    %470 = vector.shape_cast %469 : vector<8xf32> to vector<8x1xf32>
    %cst_172 = arith.constant 0.000000e+00 : f32
    %471 = vector.broadcast %cst_172 : f32 to vector<8x256xf32>
    %472 = arith.select %465, %463, %471 : vector<8x256xi1>, vector<8x256xf32>
    %cst_173 = arith.constant dense<0.000000e+00> : vector<8xf32>
    %473 = vector.multi_reduction <add>, %472, %cst_173 [1] : vector<8x256xf32> to vector<8xf32>
    %474 = vector.shape_cast %473 : vector<8xf32> to vector<8x1xf32>
    %475 = tpu.bitcast %462 : vector<8x1xi32> -> vector<8x1xf32>
    %cst_174 = arith.constant 2.500000e+01 : f32
    %476 = vector.broadcast %cst_174 : f32 to vector<8x1xf32>
    %477 = arith.subf %476, %470 : vector<8x1xf32>
    %478 = arith.mulf %477, %475 : vector<8x1xf32>
    %479 = arith.addf %474, %478 : vector<8x1xf32>
    %cst_175 = arith.constant 4.000000e-02 : f32
    %480 = vector.broadcast %cst_175 : f32 to vector<8x1xf32>
    %481 = arith.mulf %479, %480 : vector<8x1xf32>
    %c0_176 = arith.constant 0 : index
    %c0_177 = arith.constant 0 : index
    %482 = vector.load %arg4[%c0_176, %c0_177] : memref<8x1xf32, #tpu.memory_space<vmem>>, vector<8x1xf32>
    tpu.vector_store %arg4[%c0_176, %c0_177], %481 {strides = array<i32>} : memref<8x1xf32, #tpu.memory_space<vmem>>, vector<8x1xf32>,
    return
  }
  func.func @transform_0(%arg0: i32) -> (i32, i32, i32) {
    %c0_i32 = arith.constant 0 : i32
    %c0_i32_0 = arith.constant 0 : i32
    %c0_i32_1 = arith.constant 0 : i32
    return %c0_i32, %arg0, %c0_i32_0 : i32, i32, i32
  }
  func.func @transform_1(%arg0: i32) -> i32 {
    %c0_i32 = arith.constant 0 : i32
    %c0_i32_0 = arith.constant 0 : i32
    return %c0_i32 : i32
  }
  func.func @transform_2(%arg0: i32) -> i32 {
    %c0_i32 = arith.constant 0 : i32
    %c0_i32_0 = arith.constant 0 : i32
    return %c0_i32 : i32
  }
  func.func @transform_3(%arg0: i32) -> (i32, i32) {
    %c0_i32 = arith.constant 0 : i32
    %c0_i32_0 = arith.constant 0 : i32
    return %arg0, %c0_i32 : i32, i32
  }
}

</mosaic_0001>

<llo_original>
// kernel: tpu_custom_call.1
$region0: #{tpu_custom_call.1}
  #allocation0 [shape = 'u32[]', space=smem, size = 0x4, offset = 0x4, fixed_abs, tag = 'smem constant byte address 0x4 - core index']
  #allocation1 [shape = 'u32[144,128]{1,0:T(1,128)}', space=vmem, size = 0x12000, scoped, tag = 'internal scratch']
  #allocation2 [shape = 'f32[1]{0:T(128)S(6)}', space=smem, size = 0x200, scoped, tag = 'scoped memory for tpu_custom_call.1']
  %s0 = inlined_call_operand.hbm [shape: f32[4,8,256], index: 0, kind: input, shape index: {}]
  %s1 = inlined_call_operand.vmem [shape: f32[4], index: 1, kind: input, shape index: {}]
  %s2 = inlined_call_operand.<no memory space> [shape: f32[1], index: 2, kind: input, shape index: {}]
  %s3 = inlined_call_operand.vmem [shape: f32[8,1], index: 3, kind: output, shape index: {}]
  %s4 = sld [smem:[#allocation0]]
  $region30: #{tpu_custom_call.1} parent=0
    _
  %s6 = ssub.s32 1, %s4
  %s7 = scalar_select 0, %s6, %s4
  %8 = sst [smem:[#allocation2]] %s2
  $region1: #{tpu_custom_call.1} parent=0
    #allocation3 [shape = 'u8[32768]{0}', space=vmem, size = 0x8000, scoped, tag = 'input window, operand 0, single buffered']
    #allocation4 [shape = 's32[1]{0}', space=sflag, size = 0x4, scoped, tag = 'scoped memory for tpu_custom_call.1']
    #allocation5 [shape = 's32[1]{0}', space=sflag, size = 0x4, scoped, tag = 'scoped memory for tpu_custom_call.1']
    #allocation6 [shape = 'u8[512]{0}', space=smem, size = 0x200, scoped, tag = 'input window, operand 1, single buffered']
    %9 = vsyncpa [#allocation4], 0
    %10 = vsyncpa [#allocation5], 0
    // Predicated region
    $region2: #{tpu_custom_call.1} parent=1 // pred_check
      _
    $region3: #{tpu_custom_call.1} parent=1 // pred_check_branch
      %12 = sbr.rel (0) target = $region5
    $region4: #{tpu_custom_call.1} parent=1 // pred_region
      %s14 = ssub.s32 1024, 1024
      %15 = vsyncadd [#allocation4], %s14
      %s16 = sshll.u32 [#allocation3], 4
      %s17 = int_to_ptr.vmem [resolvable:$true] %s16
      %22 = dma.hbm_to_vmem [thread:$0]  %s0, 1024, %s17, [#allocation4], 256, 256, 16
    $region5: #{tpu_custom_call.1} parent=1 // pred_fallthru
      _
    // Predicated region
    $region6: #{tpu_custom_call.1} parent=1 // pred_check
      _
    $region7: #{tpu_custom_call.1} parent=1 // pred_check_branch
      %24 = sbr.rel (0) target = $region9
    $region8: #{tpu_custom_call.1} parent=1 // pred_region
      %s26 = ssub.s32 16, 16
      %27 = vsyncadd [#allocation5], %s26
      %s29 = sshll.u32 %s1, 4
      %s30 = int_to_ptr.vmem [resolvable:$true] %s29
      %32 = dma.vmem_to_smem %s30, 16, [#allocation6], [#allocation5]
    $region9: #{tpu_custom_call.1} parent=1 // pred_fallthru
      _
    // Predicated region
    $region10: #{tpu_custom_call.1} parent=1 // pred_check
      _
    $region11: #{tpu_custom_call.1} parent=1 // pred_check_branch
      %34 = sbr.rel (0) target = $region13
    $region12: #{tpu_custom_call.1} parent=1 // pred_region
      _
    $region13: #{tpu_custom_call.1} parent=1 // pred_fallthru
      _
    // Predicated region
    $region14: #{tpu_custom_call.1} parent=1 // pred_check
      _
    $region15: #{tpu_custom_call.1} parent=1 // pred_check_branch
      %36 = sbr.rel (0) target = $region17
    $region16: #{tpu_custom_call.1} parent=1 // pred_region
      %37 = dma.done [#allocation4], 1024
    $region17: #{tpu_custom_call.1} parent=1 // pred_fallthru
      _
    // Predicated region
    $region18: #{tpu_custom_call.1} parent=1 // pred_check
      _
    $region19: #{tpu_custom_call.1} parent=1 // pred_check_branch
      %39 = sbr.rel (0) target = $region21
    $region20: #{tpu_custom_call.1} parent=1 // pred_region
      %40 = dma.done [#allocation5], 16
    $region21: #{tpu_custom_call.1} parent=1 // pred_fallthru
      _
    %41 = sfence
    %v42 = vld [vmem:[#allocation3] sm:$0xff]
    %v43 = vld [vmem:[#allocation3 + $0x8] sm:$0xff]
    %s44 = sld [smem:[#allocation6]]
    %v45 = vstv %s44
    %v46 = vmul.f32 %v42, %v45
    %v47 = vmul.f32 %v43, %v45
    %s48 = scalar_lea.vmem [#allocation3], 16
    %v49 = vld [vmem:[%s48] sm:$0xff]
    %v50 = vld [vmem:[%s48 + $0x8] sm:$0xff]
    %s51 = sld [smem:[#allocation6 + $0x1]]
    %v52 = vstv %s51
    %v53 = vmul.f32 %v49, %v52
    %v54 = vmul.f32 %v50, %v52
    %v55 = vadd.f32 %v46, %v53
    %v56 = vadd.f32 %v47, %v54
    %s57 = scalar_lea.vmem [#allocation3], 32
    %v58 = vld [vmem:[%s57] sm:$0xff]
    %v59 = vld [vmem:[%s57 + $0x8] sm:$0xff]
    %s60 = sld [smem:[#allocation6 + $0x2]]
    %v61 = vstv %s60
    %v62 = vmul.f32 %v58, %v61
    %v63 = vmul.f32 %v59, %v61
    %v64 = vadd.f32 %v55, %v62
    %v65 = vadd.f32 %v56, %v63
    %s66 = scalar_lea.vmem [#allocation3], 48
    %v67 = vld [vmem:[%s66] sm:$0xff]
    %v68 = vld [vmem:[%s66 + $0x8] sm:$0xff]
    %s69 = sld [smem:[#allocation6 + $0x3]]
    %v70 = vstv %s69
    %v71 = vmul.f32 %v67, %v70
    %v72 = vmul.f32 %v68, %v70
    %v73 = vadd.f32 %v64, %v71
    %v74 = vadd.f32 %v65, %v72
    %s75 = sld [smem:[#allocation2]]
    %v76 = vstv %s75
    %v77 = vadd.f32 %v73, %v76
    %v78 = vadd.f32 %v74, %v76
    %v79 = vand.u32 2147483647, %v77
    %v80 = vand.u32 2147483647, %v78
    %vm83 = vcmp.ge.s32.totalorder %v79, 1073741824
    %vm84 = vcmp.ge.s32.totalorder %v80, 1073741824
    %v85 = vsel %vm83, 1.0, 0.0
    %v86 = vsel %vm84, 1.0, 0.0
    %v87 = vadd.f32 %v85, %v86
    %88 = vadd.xlane.f32.xlu0 %v87
    %v89 = vpop.xlane.xlu0 %88
    %vm90 = vcmp.ge.f32.partialorder %v89, 25.0
    %v91 = vsel %vm90, 1073741824, 0
    %v92 = vor.u32 %v91, 536870912
    %vm93 = vcmp.ge.s32.totalorder %v79, %v92
    %vm94 = vcmp.ge.s32.totalorder %v80, %v92
    %v95 = vsel %vm93, 1.0, 0.0
    %v96 = vsel %vm94, 1.0, 0.0
    %v97 = vadd.f32 %v95, %v96
    %98 = vadd.xlane.f32.xlu0 %v97
    %v99 = vpop.xlane.xlu0 %98
    %vm100 = vcmp.ge.f32.partialorder %v99, 25.0
    %v101 = vsel %vm100, %v92, %v91
    %v102 = vor.u32 %v101, 268435456
    %vm103 = vcmp.ge.s32.totalorder %v79, %v102
    %vm104 = vcmp.ge.s32.totalorder %v80, %v102
    %v105 = vsel %vm103, 1.0, 0.0
    %v106 = vsel %vm104, 1.0, 0.0
    %v107 = vadd.f32 %v105, %v106
    %108 = vadd.xlane.f32.xlu0 %v107
    %v109 = vpop.xlane.xlu0 %108
    %vm110 = vcmp.ge.f32.partialorder %v109, 25.0
    %v111 = vsel %vm110, %v102, %v101
    %v112 = vor.u32 %v111, 134217728
    %vm113 = vcmp.ge.s32.totalorder %v79, %v112
    %vm114 = vcmp.ge.s32.totalorder %v80, %v112
    %v115 = vsel %vm113, 1.0, 0.0
    %v116 = vsel %vm114, 1.0, 0.0
    %v117 = vadd.f32 %v115, %v116
    %118 = vadd.xlane.f32.xlu0 %v117
    %v119 = vpop.xlane.xlu0 %118
    %vm120 = vcmp.ge.f32.partialorder %v119, 25.0
    %v121 = vsel %vm120, %v112, %v111
    %v122 = vor.u32 %v121, 67108864
    %vm123 = vcmp.ge.s32.totalorder %v79, %v122
    %vm124 = vcmp.ge.s32.totalorder %v80, %v122
    %v125 = vsel %vm123, 1.0, 0.0
    %v126 = vsel %vm124, 1.0, 0.0
    %v127 = vadd.f32 %v125, %v126
    %128 = vadd.xlane.f32.xlu0 %v127
    %v129 = vpop.xlane.xlu0 %128
    %vm130 = vcmp.ge.f32.partialorder %v129, 25.0
    %v131 = vsel %vm130, %v122, %v121
    %v132 = vor.u32 %v131, 33554432
    %vm133 = vcmp.ge.s32.totalorder %v79, %v132
    %vm134 = vcmp.ge.s32.totalorder %v80, %v132
    %v135 = vsel %vm133, 1.0, 0.0
    %v136 = vsel %vm134, 1.0, 0.0
    %v137 = vadd.f32 %v135, %v136
    %138 = vadd.xlane.f32.xlu0 %v137
    %v139 = vpop.xlane.xlu0 %138
    %vm140 = vcmp.ge.f32.partialorder %v139, 25.0
    %v141 = vsel %vm140, %v132, %v131
    %v142 = vor.u32 %v141, 16777216
    %vm143 = vcmp.ge.s32.totalorder %v79, %v142
    %vm144 = vcmp.ge.s32.totalorder %v80, %v142
    %v145 = vsel %vm143, 1.0, 0.0
    %v146 = vsel %vm144, 1.0, 0.0
    %v147 = vadd.f32 %v145, %v146
    %148 = vadd.xlane.f32.xlu0 %v147
    %v149 = vpop.xlane.xlu0 %148
    %vm150 = vcmp.ge.f32.partialorder %v149, 25.0
    %v151 = vsel %vm150, %v142, %v141
    %v152 = vor.u32 %v151, 8388608
    %vm153 = vcmp.ge.s32.totalorder %v79, %v152
    %vm154 = vcmp.ge.s32.totalorder %v80, %v152
    %v155 = vsel %vm153, 1.0, 0.0
    %v156 = vsel %vm154, 1.0, 0.0
    %v157 = vadd.f32 %v155, %v156
    %158 = vadd.xlane.f32.xlu0 %v157
    %v159 = vpop.xlane.xlu0 %158
    %vm160 = vcmp.ge.f32.partialorder %v159, 25.0
    %v161 = vsel %vm160, %v152, %v151
    %v162 = vor.u32 %v161, 4194304
    %vm163 = vcmp.ge.s32.totalorder %v79, %v162
    %vm164 = vcmp.ge.s32.totalorder %v80, %v162
    %v165 = vsel %vm163, 1.0, 0.0
    %v166 = vsel %vm164, 1.0, 0.0
    %v167 = vadd.f32 %v165, %v166
    %168 = vadd.xlane.f32.xlu0 %v167
    %v169 = vpop.xlane.xlu0 %168
    %vm170 = vcmp.ge.f32.partialorder %v169, 25.0
    %v171 = vsel %vm170, %v162, %v161
    %v172 = vor.u32 %v171, 2097152
    %vm173 = vcmp.ge.s32.totalorder %v79, %v172
    %vm174 = vcmp.ge.s32.totalorder %v80, %v172
    %v175 = vsel %vm173, 1.0, 0.0
    %v176 = vsel %vm174, 1.0, 0.0
    %v177 = vadd.f32 %v175, %v176
    %178 = vadd.xlane.f32.xlu0 %v177
    %v179 = vpop.xlane.xlu0 %178
    %vm180 = vcmp.ge.f32.partialorder %v179, 25.0
    %v181 = vsel %vm180, %v172, %v171
    %v182 = vor.u32 %v181, 1048576
    %vm183 = vcmp.ge.s32.totalorder %v79, %v182
    %vm184 = vcmp.ge.s32.totalorder %v80, %v182
    %v185 = vsel %vm183, 1.0, 0.0
    %v186 = vsel %vm184, 1.0, 0.0
    %v187 = vadd.f32 %v185, %v186
    %188 = vadd.xlane.f32.xlu0 %v187
    %v189 = vpop.xlane.xlu0 %188
    %vm190 = vcmp.ge.f32.partialorder %v189, 25.0
    %v191 = vsel %vm190, %v182, %v181
    %v192 = vor.u32 %v191, 524288
    %vm193 = vcmp.ge.s32.totalorder %v79, %v192
    %vm194 = vcmp.ge.s32.totalorder %v80, %v192
    %v195 = vsel %vm193, 1.0, 0.0
    %v196 = vsel %vm194, 1.0, 0.0
    %v197 = vadd.f32 %v195, %v196
    %198 = vadd.xlane.f32.xlu0 %v197
    %v199 = vpop.xlane.xlu0 %198
    %vm200 = vcmp.ge.f32.partialorder %v199, 25.0
    %v201 = vsel %vm200, %v192, %v191
    %v202 = vor.u32 %v201, 262144
    %vm203 = vcmp.ge.s32.totalorder %v79, %v202
    %vm204 = vcmp.ge.s32.totalorder %v80, %v202
    %v205 = vsel %vm203, 1.0, 0.0
    %v206 = vsel %vm204, 1.0, 0.0
    %v207 = vadd.f32 %v205, %v206
    %208 = vadd.xlane.f32.xlu0 %v207
    %v209 = vpop.xlane.xlu0 %208
    %vm210 = vcmp.ge.f32.partialorder %v209, 25.0
    %v211 = vsel %vm210, %v202, %v201
    %v212 = vor.u32 %v211, 131072
    %vm213 = vcmp.ge.s32.totalorder %v79, %v212
    %vm214 = vcmp.ge.s32.totalorder %v80, %v212
    %v215 = vsel %vm213, 1.0, 0.0
    %v216 = vsel %vm214, 1.0, 0.0
    %v217 = vadd.f32 %v215, %v216
    %218 = vadd.xlane.f32.xlu0 %v217
    %v219 = vpop.xlane.xlu0 %218
    %vm220 = vcmp.ge.f32.partialorder %v219, 25.0
    %v221 = vsel %vm220, %v212, %v211
    %v222 = vor.u32 %v221, 65536
    %vm223 = vcmp.ge.s32.totalorder %v79, %v222
    %vm224 = vcmp.ge.s32.totalorder %v80, %v222
    %v225 = vsel %vm223, 1.0, 0.0
    %v226 = vsel %vm224, 1.0, 0.0
    %v227 = vadd.f32 %v225, %v226
    %228 = vadd.xlane.f32.xlu0 %v227
    %v229 = vpop.xlane.xlu0 %228
    %vm230 = vcmp.ge.f32.partialorder %v229, 25.0
    %v231 = vsel %vm230, %v222, %v221
    %v232 = vor.u32 %v231, 32768
    %vm233 = vcmp.ge.s32.totalorder %v79, %v232
    %vm234 = vcmp.ge.s32.totalorder %v80, %v232
    %v235 = vsel %vm233, 1.0, 0.0
    %v236 = vsel %vm234, 1.0, 0.0
    %v237 = vadd.f32 %v235, %v236
    %238 = vadd.xlane.f32.xlu0 %v237
    %v239 = vpop.xlane.xlu0 %238
    %vm240 = vcmp.ge.f32.partialorder %v239, 25.0
    %v241 = vsel %vm240, %v232, %v231
    %v242 = vor.u32 %v241, 16384
    %vm243 = vcmp.ge.s32.totalorder %v79, %v242
    %vm244 = vcmp.ge.s32.totalorder %v80, %v242
    %v245 = vsel %vm243, 1.0, 0.0
    %v246 = vsel %vm244, 1.0, 0.0
    %v247 = vadd.f32 %v245, %v246
    %248 = vadd.xlane.f32.xlu0 %v247
    %v249 = vpop.xlane.xlu0 %248
    %vm250 = vcmp.ge.f32.partialorder %v249, 25.0
    %v251 = vsel %vm250, %v242, %v241
    %v252 = vor.u32 %v251, 8192
    %vm253 = vcmp.ge.s32.totalorder %v79, %v252
    %vm254 = vcmp.ge.s32.totalorder %v80, %v252
    %v255 = vsel %vm253, 1.0, 0.0
    %v256 = vsel %vm254, 1.0, 0.0
    %v257 = vadd.f32 %v255, %v256
    %258 = vadd.xlane.f32.xlu0 %v257
    %v259 = vpop.xlane.xlu0 %258
    %vm260 = vcmp.ge.f32.partialorder %v259, 25.0
    %v261 = vsel %vm260, %v252, %v251
    %v262 = vor.u32 %v261, 4096
    %vm263 = vcmp.ge.s32.totalorder %v79, %v262
    %vm264 = vcmp.ge.s32.totalorder %v80, %v262
    %v265 = vsel %vm263, 1.0, 0.0
    %v266 = vsel %vm264, 1.0, 0.0
    %v267 = vadd.f32 %v265, %v266
    %268 = vadd.xlane.f32.xlu0 %v267
    %v269 = vpop.xlane.xlu0 %268
    %vm270 = vcmp.ge.f32.partialorder %v269, 25.0
    %v271 = vsel %vm270, %v262, %v261
    %v272 = vor.u32 %v271, 2048
    %vm273 = vcmp.ge.s32.totalorder %v79, %v272
    %vm274 = vcmp.ge.s32.totalorder %v80, %v272
    %v275 = vsel %vm273, 1.0, 0.0
    %v276 = vsel %vm274, 1.0, 0.0
    %v277 = vadd.f32 %v275, %v276
    %278 = vadd.xlane.f32.xlu0 %v277
    %v279 = vpop.xlane.xlu0 %278
    %vm280 = vcmp.ge.f32.partialorder %v279, 25.0
    %v281 = vsel %vm280, %v272, %v271
    %v282 = vor.u32 %v281, 1024
    %vm283 = vcmp.ge.s32.totalorder %v79, %v282
    %vm284 = vcmp.ge.s32.totalorder %v80, %v282
    %v285 = vsel %vm283, 1.0, 0.0
    %v286 = vsel %vm284, 1.0, 0.0
    %v287 = vadd.f32 %v285, %v286
    %288 = vadd.xlane.f32.xlu0 %v287
    %v289 = vpop.xlane.xlu0 %288
    %vm290 = vcmp.ge.f32.partialorder %v289, 25.0
    %v291 = vsel %vm290, %v282, %v281
    %v292 = vor.u32 %v291, 512
    %vm293 = vcmp.ge.s32.totalorder %v79, %v292
    %vm294 = vcmp.ge.s32.totalorder %v80, %v292
    %v295 = vsel %vm293, 1.0, 0.0
    %v296 = vsel %vm294, 1.0, 0.0
    %v297 = vadd.f32 %v295, %v296
    %298 = vadd.xlane.f32.xlu0 %v297
    %v299 = vpop.xlane.xlu0 %298
    %vm300 = vcmp.ge.f32.partialorder %v299, 25.0
    %v301 = vsel %vm300, %v292, %v291
    %v302 = vor.u32 %v301, 256
    %vm303 = vcmp.ge.s32.totalorder %v79, %v302
    %vm304 = vcmp.ge.s32.totalorder %v80, %v302
    %v305 = vsel %vm303, 1.0, 0.0
    %v306 = vsel %vm304, 1.0, 0.0
    %v307 = vadd.f32 %v305, %v306
    %308 = vadd.xlane.f32.xlu0 %v307
    %v309 = vpop.xlane.xlu0 %308
    %vm310 = vcmp.ge.f32.partialorder %v309, 25.0
    %v311 = vsel %vm310, %v302, %v301
    %v312 = vor.u32 %v311, 128
    %vm313 = vcmp.ge.s32.totalorder %v79, %v312
    %vm314 = vcmp.ge.s32.totalorder %v80, %v312
    %v315 = vsel %vm313, 1.0, 0.0
    %v316 = vsel %vm314, 1.0, 0.0
    %v317 = vadd.f32 %v315, %v316
    %318 = vadd.xlane.f32.xlu0 %v317
    %v319 = vpop.xlane.xlu0 %318
    %vm320 = vcmp.ge.f32.partialorder %v319, 25.0
    %v321 = vsel %vm320, %v312, %v311
    %v322 = vor.u32 %v321, 64
    %vm323 = vcmp.ge.s32.totalorder %v79, %v322
    %vm324 = vcmp.ge.s32.totalorder %v80, %v322
    %v325 = vsel %vm323, 1.0, 0.0
    %v326 = vsel %vm324, 1.0, 0.0
    %v327 = vadd.f32 %v325, %v326
    %328 = vadd.xlane.f32.xlu0 %v327
    %v329 = vpop.xlane.xlu0 %328
    %vm330 = vcmp.ge.f32.partialorder %v329, 25.0
    %v331 = vsel %vm330, %v322, %v321
    %v332 = vor.u32 %v331, 32
    %vm333 = vcmp.ge.s32.totalorder %v79, %v332
    %vm334 = vcmp.ge.s32.totalorder %v80, %v332
    %v335 = vsel %vm333, 1.0, 0.0
    %v336 = vsel %vm334, 1.0, 0.0
    %v337 = vadd.f32 %v335, %v336
    %338 = vadd.xlane.f32.xlu0 %v337
    %v339 = vpop.xlane.xlu0 %338
    %vm340 = vcmp.ge.f32.partialorder %v339, 25.0
    %v341 = vsel %vm340, %v332, %v331
    %v342 = vor.u32 %v341, 16
    %vm343 = vcmp.ge.s32.totalorder %v79, %v342
    %vm344 = vcmp.ge.s32.totalorder %v80, %v342
    %v345 = vsel %vm343, 1.0, 0.0
    %v346 = vsel %vm344, 1.0, 0.0
    %v347 = vadd.f32 %v345, %v346
    %348 = vadd.xlane.f32.xlu0 %v347
    %v349 = vpop.xlane.xlu0 %348
    %vm350 = vcmp.ge.f32.partialorder %v349, 25.0
    %v351 = vsel %vm350, %v342, %v341
    %v352 = vor.u32 %v351, 8
    %vm353 = vcmp.ge.s32.totalorder %v79, %v352
    %vm354 = vcmp.ge.s32.totalorder %v80, %v352
    %v355 = vsel %vm353, 1.0, 0.0
    %v356 = vsel %vm354, 1.0, 0.0
    %v357 = vadd.f32 %v355, %v356
    %358 = vadd.xlane.f32.xlu0 %v357
    %v359 = vpop.xlane.xlu0 %358
    %vm360 = vcmp.ge.f32.partialorder %v359, 25.0
    %v361 = vsel %vm360, %v352, %v351
    %v362 = vor.u32 %v361, 4
    %vm363 = vcmp.ge.s32.totalorder %v79, %v362
    %vm364 = vcmp.ge.s32.totalorder %v80, %v362
    %v365 = vsel %vm363, 1.0, 0.0
    %v366 = vsel %vm364, 1.0, 0.0
    %v367 = vadd.f32 %v365, %v366
    %368 = vadd.xlane.f32.xlu0 %v367
    %v369 = vpop.xlane.xlu0 %368
    %vm370 = vcmp.ge.f32.partialorder %v369, 25.0
    %v371 = vsel %vm370, %v362, %v361
    %v372 = vor.u32 %v371, 2
    %vm373 = vcmp.ge.s32.totalorder %v79, %v372
    %vm374 = vcmp.ge.s32.totalorder %v80, %v372
    %v375 = vsel %vm373, 1.0, 0.0
    %v376 = vsel %vm374, 1.0, 0.0
    %v377 = vadd.f32 %v375, %v376
    %378 = vadd.xlane.f32.xlu0 %v377
    %v379 = vpop.xlane.xlu0 %378
    %vm380 = vcmp.ge.f32.partialorder %v379, 25.0
    %v381 = vsel %vm380, %v372, %v371
    %v382 = vor.u32 %v381, 1
    %vm383 = vcmp.ge.s32.totalorder %v79, %v382
    %vm384 = vcmp.ge.s32.totalorder %v80, %v382
    %v385 = vsel %vm383, 1.0, 0.0
    %v386 = vsel %vm384, 1.0, 0.0
    %v387 = vadd.f32 %v385, %v386
    %388 = vadd.xlane.f32.xlu0 %v387
    %v389 = vpop.xlane.xlu0 %388
    %vm390 = vcmp.ge.f32.partialorder %v389, 25.0
    %v391 = vsel %vm390, %v382, %v381
    %vm392 = vcmp.gt.s32.totalorder %v79, %v391
    %vm393 = vcmp.gt.s32.totalorder %v80, %v391
    %v394 = vsel %vm392, 1.0, 0.0
    %v395 = vsel %vm393, 1.0, 0.0
    %v396 = vadd.f32 %v394, %v395
    %397 = vadd.xlane.f32.xlu0 %v396
    %v398 = vpop.xlane.xlu0 %397
    %v399 = vsel %vm392, %v79, 0.0
    %v400 = vsel %vm393, %v80, 0.0
    %v401 = vadd.f32 %v399, %v400
    %402 = vadd.xlane.f32.xlu0 %v401
    %v403 = vpop.xlane.xlu0 %402
    %v405 = vsub.f32 25.0, %v398
    %v406 = vmul.f32 %v405, %v391
    %v407 = vadd.f32 %v403, %v406
    %v408 = vmul.f32 %v407, 0.04
    %vm409 = vcmask 7168
    %410 = vst.msk [vmem:[%s3] sm:$0xff] %vm409, %v408
    // Predicated region
    $region22: #{tpu_custom_call.1} parent=1 // pred_check
      _
    $region23: #{tpu_custom_call.1} parent=1 // pred_check_branch
      %412 = sbr.rel (0) target = $region25
    $region24: #{tpu_custom_call.1} parent=1 // pred_region
      _
    $region25: #{tpu_custom_call.1} parent=1 // pred_fallthru
      _
    // Predicated region
    $region26: #{tpu_custom_call.1} parent=1 // pred_check
      _
    $region27: #{tpu_custom_call.1} parent=1 // pred_check_branch
      %414 = sbr.rel (0) target = $region29
    $region28: #{tpu_custom_call.1} parent=1 // pred_region
      _
    $region29: #{tpu_custom_call.1} parent=1 // pred_fallthru
      _
    %415 = vsyncpa [#allocation4], 1
    %416 = vsyncpa [#allocation5], 1

</llo_original>
